<compile_context>
chip_gen: v5e
topology: v5e:2x2
jax: 0.10.0
libtpu: 0.0.40
codegen_flags: <defaults>
</compile_context>

<pallas_src>
import functools

import jax
import jax.numpy as jnp
from jax.experimental import pallas as pl
from jax.experimental.pallas import tpu as pltpu


STREAM_DTYPE = jnp.bfloat16          # A_hat / XW streamed in bf16, f32 accumulate
LANE = 128                           # lane width (last-dim alignment)
MAX_TILE = 512                       # row / K tile; safe on v5e/v6e/v7x VMEM
VMEM_LIMIT_BYTES = 32 * 1024 * 1024  # explicit scoped-VMEM budget (all gens)


def _round_up(x, m):
    return ((x + m - 1) // m) * m


def _pad2d(x, rows, cols):
    return jnp.pad(x, ((0, rows - x.shape[0]), (0, cols - x.shape[1])))


def _node_tiling(num_nodes):
    """Pick (tile, padded_n): one lane-aligned tile for small graphs,
    512-wide tiles for large ones (bf16 A_hat tile = 512 KiB)."""
    n128 = _round_up(max(num_nodes, 1), LANE)
    if n128 <= MAX_TILE:
        return n128, n128
    return MAX_TILE, _round_up(num_nodes, MAX_TILE)


# ----------------------------------------------------------------------------
# Kernel 1: feature transform  XW = X @ W  (hoisted out of the aggregation)
# ----------------------------------------------------------------------------
def _xw_kernel(x_ref, w_ref, o_ref):
    o_ref[...] = jnp.dot(
        x_ref[...], w_ref[...], preferred_element_type=jnp.float32
    ).astype(o_ref.dtype)


def _feature_transform(x_p, w_p, tm):
    n_pad, fin_pad = x_p.shape
    fout_pad = w_p.shape[1]
    return pl.pallas_call(
        _xw_kernel,
        out_shape=jax.ShapeDtypeStruct((n_pad, fout_pad), STREAM_DTYPE),
        grid_spec=pltpu.PrefetchScalarGridSpec(
            num_scalar_prefetch=0,
            grid=(n_pad // tm,),
            in_specs=[
                pl.BlockSpec((tm, fin_pad), lambda i: (i, 0)),
                pl.BlockSpec((fin_pad, fout_pad), lambda i: (0, 0)),
            ],
            out_specs=pl.BlockSpec((tm, fout_pad), lambda i: (i, 0)),
        ),
        compiler_params=pltpu.CompilerParams(
            dimension_semantics=("parallel",),
            vmem_limit_bytes=VMEM_LIMIT_BYTES,
        ),
        cost_estimate=pl.CostEstimate(
            flops=2 * n_pad * fin_pad * fout_pad,
            transcendentals=0,
            bytes_accessed=x_p.size * 4 + w_p.size * 4 + n_pad * fout_pad * 2,
        ),
    )(x_p, w_p)


# ----------------------------------------------------------------------------
# Kernel 2: tiled aggregation  out = act(A_hat @ XW + b)
# ----------------------------------------------------------------------------
def _agg_kernel(a_ref, xw_ref, b_ref, o_ref, acc_ref, *, activation):
    k = pl.program_id(1)

    @pl.when(k == 0)
    def _():
        acc_ref[...] = jnp.zeros_like(acc_ref)

    acc_ref[...] += jnp.dot(
        a_ref[...], xw_ref[...], preferred_element_type=jnp.float32
    )

    @pl.when(k == pl.num_programs(1) - 1)
    def _():
        h = acc_ref[...] + b_ref[...]
        if activation == "relu":
            h = jnp.maximum(h, 0.0)
        elif activation == "sigmoid":
            h = jax.nn.sigmoid(h)
        o_ref[...] = h.astype(o_ref.dtype)


def _aggregate(a_pad, xw, b_p, activation, tm, tk):
    n_pad = a_pad.shape[0]
    fout_pad = xw.shape[1]
    num_k = n_pad // tk

    # Deeper A_hat buffering hides HBM fetch latency behind short MXU bursts
    # (matters most on v5e where the aggregation is HBM-bound at small F_out).
    a_kwargs = {}
    if num_k >= 3:
        a_kwargs["pipeline_mode"] = pl.Buffered(3)
    a_spec = pl.BlockSpec((tm, tk), lambda i, k: (i, k), **a_kwargs)

    kernel = functools.partial(_agg_kernel, activation=activation)
    trans = n_pad * fout_pad if activation == "sigmoid" else 0
    return pl.pallas_call(
        kernel,
        out_shape=jax.ShapeDtypeStruct((n_pad, fout_pad), jnp.float32),
        grid_spec=pltpu.PrefetchScalarGridSpec(
            num_scalar_prefetch=0,
            grid=(n_pad // tm, num_k),  # row tiles first (parallel), K last
            in_specs=[
                a_spec,                                          # A_hat (TM, TK) bf16
                pl.BlockSpec((tk, fout_pad), lambda i, k: (k, 0)),   # XW (TK, Fo)
                pl.BlockSpec((1, fout_pad), lambda i, k: (0, 0)),    # bias
            ],
            out_specs=pl.BlockSpec((tm, fout_pad), lambda i, k: (i, 0)),
            scratch_shapes=[pltpu.VMEM((tm, fout_pad), jnp.float32)],
        ),
        compiler_params=pltpu.CompilerParams(
            dimension_semantics=("parallel", "arbitrary"),
            vmem_limit_bytes=VMEM_LIMIT_BYTES,
        ),
        cost_estimate=pl.CostEstimate(
            flops=2 * n_pad * n_pad * fout_pad,
            transcendentals=trans,
            bytes_accessed=(
                n_pad * n_pad * 2                        # A_hat (bf16), once
                + (n_pad // tm) * n_pad * fout_pad * 2   # XW per row tile
                + n_pad * fout_pad * 4                   # output
            ),
        ),
    )(a_pad, xw, b_p)


# ----------------------------------------------------------------------------
# Layer / model wrappers
# ----------------------------------------------------------------------------
def gcn_layer(a_pad, x, w, b, activation, num_nodes, tm, tk):
    """act(A_hat @ (X @ W) + b) for one GCNConv layer (lane-padded, tiled)."""
    n_pad = a_pad.shape[0]
    f_in, f_out = w.shape
    fin_pad = _round_up(f_in, LANE)
    fout_pad = _round_up(f_out, LANE)

    x_p = _pad2d(x.astype(jnp.float32), n_pad, fin_pad)
    w_p = _pad2d(w.astype(jnp.float32), fin_pad, fout_pad)
    b_p = _pad2d(b.astype(jnp.float32), 1, fout_pad)

    xw = _feature_transform(x_p, w_p, tm)                 # (n_pad, fout_pad) bf16
    out = _aggregate(a_pad, xw, b_p, activation, tm, tk)  # (n_pad, fout_pad) f32
    return out[:num_nodes, :f_out]


def normalized_adjacency(edge_index, num_nodes):
    """A_hat = D^{-1/2} (A + remaining self loops) D^{-1/2} from [2, E] edges."""
    src = edge_index[0]
    dst = edge_index[1]
    a = jnp.zeros((num_nodes, num_nodes), jnp.float32)
    # message flows src -> dst (row = destination); duplicates accumulate (PyG).
    a = a.at[dst, src].add(1.0)
    # add_remaining_self_loops: only nodes without an existing self-loop get one.
    has_self_loop = jnp.diagonal(a) > 0.0
    a = a + jnp.diag(jnp.where(has_self_loop, 0.0, 1.0))
    deg = jnp.sum(a, axis=1)
    d_inv_sqrt = jnp.where(deg > 0, jax.lax.rsqrt(deg), 0.0)
    return d_inv_sqrt[:, None] * a * d_inv_sqrt[None, :]


def gcn_forward(x, edge_index, params):
    n = x.shape[0]
    tm, n_pad = _node_tiling(n)
    tk = tm
    a_hat = normalized_adjacency(edge_index, n)
    # Stream the O(N^2) adjacency as bf16 (halves HBM/VMEM traffic; f32 accum).
    a_pad = _pad2d(a_hat, n_pad, n_pad).astype(STREAM_DTYPE)
    h = gcn_layer(a_pad, x, params["w1"], params["b1"], "relu", n, tm, tk)
    out = gcn_layer(a_pad, h, params["w2"], params["b2"], "sigmoid", n, tm, tk)
    return out


def _reference_forward(x, edge_index, params):
    """Pure-JAX reference applying the same bf16 rounding to streamed operands."""
    n = x.shape[0]
    a = normalized_adjacency(edge_index, n)
    a = a.astype(STREAM_DTYPE).astype(jnp.float32)

    def layer(xx, w, b, act):
        xw = (xx @ w).astype(STREAM_DTYPE).astype(jnp.float32)
        return act(a @ xw + b)

    h = layer(x, params["w1"], params["b1"], lambda t: jnp.maximum(t, 0.0))
    return layer(h, params["w2"], params["b2"], jax.nn.sigmoid)


if __name__ == "__main__":
    def make_inputs(key, num_nodes, in_c, hid_c, out_c, num_edges):
        k_x, k_e, k_w1, k_b1, k_w2, k_b2 = jax.random.split(key, 6)
        x = jax.random.normal(k_x, (num_nodes, in_c), jnp.float32)
        edge_index = jax.random.randint(
            k_e, (2, num_edges), 0, num_nodes, dtype=jnp.int32)
        params = {
            "w1": jax.random.normal(k_w1, (in_c, hid_c), jnp.float32)
            * (1.0 / jnp.sqrt(in_c)),
            "b1": jax.random.normal(k_b1, (1, hid_c), jnp.float32) * 0.01,
            "w2": jax.random.normal(k_w2, (hid_c, out_c), jnp.float32)
            * (1.0 / jnp.sqrt(hid_c)),
            "b2": jax.random.normal(k_b2, (1, out_c), jnp.float32) * 0.01,
        }
        return x, edge_index, params

    fwd = jax.jit(gcn_forward)

    # Small graph (single-tile path), consistent with GCN(in, hidden, out).
    x, edge_index, params = make_inputs(jax.random.PRNGKey(0), 16, 8, 32, 4, 32)
    out = jax.block_until_ready(fwd(x, edge_index, params))
    ref = _reference_forward(x, edge_index, params)
    assert out.shape == (16, 4)
    assert jnp.allclose(out, ref, atol=2e-2, rtol=2e-2), \
        float(jnp.max(jnp.abs(out - ref)))

    # Larger graph: exercises the multi-tile grid + K-accumulation path.
    x2, ei2, params2 = make_inputs(jax.random.PRNGKey(1), 640, 16, 64, 8, 4096)
    out2 = jax.block_until_ready(fwd(x2, ei2, params2))
    ref2 = _reference_forward(x2, ei2, params2)
    assert out2.shape == (640, 8)
    assert jnp.allclose(out2, ref2, atol=2e-2, rtol=2e-2), \
        float(jnp.max(jnp.abs(out2 - ref2)))

    print("KERNEL_OK")
</pallas_src>

<mosaic_0001>
module attributes {stable_mosaic.version = 11 : i64} {
  func.func @_agg_kernel(%arg0: i32, %arg1: i32, %arg2: memref<128x128xbf16, #tpu.memory_space<vmem>>, %arg3: memref<128x128xbf16, #tpu.memory_space<vmem>>, %arg4: memref<1x128xf32, #tpu.memory_space<vmem>>, %arg5: memref<128x128xf32, #tpu.memory_space<vmem>>, %arg6: memref<128x128xf32, #tpu.memory_space<vmem>>) attributes {dimension_semantics = [#tpu.dimension_semantics<parallel>, #tpu.dimension_semantics<arbitrary>], iteration_bounds = array<i64: 1, 1>, scalar_prefetch = 0 : i64, scratch_operands = 1 : i64, tpu.core_type = #tpu.core_type<tc>, window_params = [{transform_indices = @transform_0, window_bounds = array<i64: 128, 128>}, {transform_indices = @transform_1, window_bounds = array<i64: 128, 128>}, {pipeline_mode = #tpu.pipeline_mode<synchronous>, transform_indices = @transform_2, window_bounds = array<i64: 1, 128>}, {transform_indices = @transform_3, window_bounds = array<i64: 128, 128>}]} {
    %c0_i32 = arith.constant 0 : i32
    %0 = arith.cmpi eq, %arg1, %c0_i32 : i32
    %1 = arith.extui %0 : i1 to i32
    %c0_i32_0 = arith.constant 0 : i32
    %2 = arith.cmpi ne, %1, %c0_i32_0 : i32
    scf.if %2 {
      %cst_10 = arith.constant 0.000000e+00 : f32
      %12 = vector.broadcast %cst_10 : f32 to vector<128x128xf32>
      %c0_11 = arith.constant 0 : index
      %c0_12 = arith.constant 0 : index
      %13 = vector.load %arg6[%c0_11, %c0_12] : memref<128x128xf32, #tpu.memory_space<vmem>>, vector<128x128xf32>
      tpu.vector_store %arg6[%c0_11, %c0_12], %12 {strides = array<i32>} : memref<128x128xf32, #tpu.memory_space<vmem>>, vector<128x128xf32>,
    } else {
    }
    %c0 = arith.constant 0 : index
    %c0_1 = arith.constant 0 : index
    %3 = vector.load %arg6[%c0, %c0_1] : memref<128x128xf32, #tpu.memory_space<vmem>>, vector<128x128xf32>
    %c0_2 = arith.constant 0 : index
    %c0_3 = arith.constant 0 : index
    %4 = vector.load %arg2[%c0_2, %c0_3] : memref<128x128xbf16, #tpu.memory_space<vmem>>, vector<128x128xbf16>
    %c0_4 = arith.constant 0 : index
    %c0_5 = arith.constant 0 : index
    %5 = vector.load %arg3[%c0_4, %c0_5] : memref<128x128xbf16, #tpu.memory_space<vmem>>, vector<128x128xbf16>
    %cst = arith.constant dense<0.000000e+00> : vector<128x128xf32>
    %6 = tpu.matmul %4, %5, %cst {dimension_numbers = #tpu.dot_dimension_numbers<[1], [0], [0], [1], [0, 0, 1, 1], [], []>} : vector<128x128xbf16>, vector<128x128xbf16>, vector<128x128xf32> -> vector<128x128xf32>
    %7 = arith.addf %3, %6 : vector<128x128xf32>
    %c0_6 = arith.constant 0 : index
    %c0_7 = arith.constant 0 : index
    %8 = vector.load %arg6[%c0_6, %c0_7] : memref<128x128xf32, #tpu.memory_space<vmem>>, vector<128x128xf32>
    tpu.vector_store %arg6[%c0_6, %c0_7], %7 {strides = array<i32>} : memref<128x128xf32, #tpu.memory_space<vmem>>, vector<128x128xf32>,
    %c0_i32_8 = arith.constant 0 : i32
    %9 = arith.cmpi eq, %arg1, %c0_i32_8 : i32
    %10 = arith.extui %9 : i1 to i32
    %c0_i32_9 = arith.constant 0 : i32
    %11 = arith.cmpi ne, %10, %c0_i32_9 : i32
    scf.if %11 {
      %c0_10 = arith.constant 0 : index
      %c0_11 = arith.constant 0 : index
      %12 = vector.load %arg6[%c0_10, %c0_11] : memref<128x128xf32, #tpu.memory_space<vmem>>, vector<128x128xf32>
      %c0_12 = arith.constant 0 : index
      %c0_13 = arith.constant 0 : index
      %13 = vector.load %arg4[%c0_12, %c0_13] : memref<1x128xf32, #tpu.memory_space<vmem>>, vector<1x128xf32>
      %14 = vector.broadcast %13 : vector<1x128xf32> to vector<128x128xf32>
      %15 = arith.addf %12, %14 : vector<128x128xf32>
      %16 = arith.negf %15 : vector<128x128xf32>
      %17 = math.exp %16 : vector<128x128xf32>
      %cst_14 = arith.constant 1.000000e+00 : f32
      %18 = vector.broadcast %cst_14 : f32 to vector<128x128xf32>
      %19 = arith.addf %18, %17 : vector<128x128xf32>
      %20 = arith.divf %18, %19 : vector<128x128xf32>
      %c0_15 = arith.constant 0 : index
      %c0_16 = arith.constant 0 : index
      %21 = vector.load %arg5[%c0_15, %c0_16] : memref<128x128xf32, #tpu.memory_space<vmem>>, vector<128x128xf32>
      tpu.vector_store %arg5[%c0_15, %c0_16], %20 {strides = array<i32>} : memref<128x128xf32, #tpu.memory_space<vmem>>, vector<128x128xf32>,
    } else {
    }
    return
  }
  func.func @transform_0(%arg0: i32, %arg1: i32) -> (i32, i32) {
    %c0_i32 = arith.constant 0 : i32
    return %arg0, %arg1 : i32, i32
  }
  func.func @transform_1(%arg0: i32, %arg1: i32) -> (i32, i32) {
    %c0_i32 = arith.constant 0 : i32
    %c0_i32_0 = arith.constant 0 : i32
    return %arg1, %c0_i32 : i32, i32
  }
  func.func @transform_2(%arg0: i32, %arg1: i32) -> (i32, i32) {
    %c0_i32 = arith.constant 0 : i32
    %c0_i32_0 = arith.constant 0 : i32
    %c0_i32_1 = arith.constant 0 : i32
    return %c0_i32, %c0_i32_0 : i32, i32
  }
  func.func @transform_3(%arg0: i32, %arg1: i32) -> (i32, i32) {
    %c0_i32 = arith.constant 0 : i32
    %c0_i32_0 = arith.constant 0 : i32
    return %arg0, %c0_i32 : i32, i32
  }
}

module attributes {stable_mosaic.version = 11 : i64} {
  func.func @_agg_kernel(%arg0: i32, %arg1: i32, %arg2: memref<128x128xbf16, #tpu.memory_space<vmem>>, %arg3: memref<128x128xbf16, #tpu.memory_space<vmem>>, %arg4: memref<1x128xf32, #tpu.memory_space<vmem>>, %arg5: memref<128x128xf32, #tpu.memory_space<vmem>>, %arg6: memref<128x128xf32, #tpu.memory_space<vmem>>) attributes {dimension_semantics = [#tpu.dimension_semantics<parallel>, #tpu.dimension_semantics<arbitrary>], iteration_bounds = array<i64: 1, 1>, scalar_prefetch = 0 : i64, scratch_operands = 1 : i64, tpu.core_type = #tpu.core_type<tc>, window_params = [{transform_indices = @transform_0, window_bounds = array<i64: 128, 128>}, {transform_indices = @transform_1, window_bounds = array<i64: 128, 128>}, {pipeline_mode = #tpu.pipeline_mode<synchronous>, transform_indices = @transform_2, window_bounds = array<i64: 1, 128>}, {transform_indices = @transform_3, window_bounds = array<i64: 128, 128>}]} {
    %c0_i32 = arith.constant 0 : i32
    %0 = arith.cmpi eq, %arg1, %c0_i32 : i32
    %1 = arith.extui %0 : i1 to i32
    %c0_i32_0 = arith.constant 0 : i32
    %2 = arith.cmpi ne, %1, %c0_i32_0 : i32
    scf.if %2 {
      %cst_10 = arith.constant 0.000000e+00 : f32
      %12 = vector.broadcast %cst_10 : f32 to vector<128x128xf32>
      %c0_11 = arith.constant 0 : index
      %c0_12 = arith.constant 0 : index
      %13 = vector.load %arg6[%c0_11, %c0_12] : memref<128x128xf32, #tpu.memory_space<vmem>>, vector<128x128xf32>
      tpu.vector_store %arg6[%c0_11, %c0_12], %12 {strides = array<i32>} : memref<128x128xf32, #tpu.memory_space<vmem>>, vector<128x128xf32>,
    } else {
    }
    %c0 = arith.constant 0 : index
    %c0_1 = arith.constant 0 : index
    %3 = vector.load %arg6[%c0, %c0_1] : memref<128x128xf32, #tpu.memory_space<vmem>>, vector<128x128xf32>
    %c0_2 = arith.constant 0 : index
    %c0_3 = arith.constant 0 : index
    %4 = vector.load %arg2[%c0_2, %c0_3] : memref<128x128xbf16, #tpu.memory_space<vmem>>, vector<128x128xbf16>
    %c0_4 = arith.constant 0 : index
    %c0_5 = arith.constant 0 : index
    %5 = vector.load %arg3[%c0_4, %c0_5] : memref<128x128xbf16, #tpu.memory_space<vmem>>, vector<128x128xbf16>
    %cst = arith.constant dense<0.000000e+00> : vector<128x128xf32>
    %6 = tpu.matmul %4, %5, %cst {dimension_numbers = #tpu.dot_dimension_numbers<[1], [0], [0], [1], [0, 0, 1, 1], [], []>} : vector<128x128xbf16>, vector<128x128xbf16>, vector<128x128xf32> -> vector<128x128xf32>
    %7 = arith.addf %3, %6 : vector<128x128xf32>
    %c0_6 = arith.constant 0 : index
    %c0_7 = arith.constant 0 : index
    %8 = vector.load %arg6[%c0_6, %c0_7] : memref<128x128xf32, #tpu.memory_space<vmem>>, vector<128x128xf32>
    tpu.vector_store %arg6[%c0_6, %c0_7], %7 {strides = array<i32>} : memref<128x128xf32, #tpu.memory_space<vmem>>, vector<128x128xf32>,
    %c0_i32_8 = arith.constant 0 : i32
    %9 = arith.cmpi eq, %arg1, %c0_i32_8 : i32
    %10 = arith.extui %9 : i1 to i32
    %c0_i32_9 = arith.constant 0 : i32
    %11 = arith.cmpi ne, %10, %c0_i32_9 : i32
    scf.if %11 {
      %c0_10 = arith.constant 0 : index
      %c0_11 = arith.constant 0 : index
      %12 = vector.load %arg6[%c0_10, %c0_11] : memref<128x128xf32, #tpu.memory_space<vmem>>, vector<128x128xf32>
      %c0_12 = arith.constant 0 : index
      %c0_13 = arith.constant 0 : index
      %13 = vector.load %arg4[%c0_12, %c0_13] : memref<1x128xf32, #tpu.memory_space<vmem>>, vector<1x128xf32>
      %14 = vector.broadcast %13 : vector<1x128xf32> to vector<128x128xf32>
      %15 = arith.addf %12, %14 : vector<128x128xf32>
      %cst_14 = arith.constant 0.000000e+00 : f32
      %16 = vector.broadcast %cst_14 : f32 to vector<128x128xf32>
      %17 = arith.maximumf %15, %16 : vector<128x128xf32>
      %c0_15 = arith.constant 0 : index
      %c0_16 = arith.constant 0 : index
      %18 = vector.load %arg5[%c0_15, %c0_16] : memref<128x128xf32, #tpu.memory_space<vmem>>, vector<128x128xf32>
      tpu.vector_store %arg5[%c0_15, %c0_16], %17 {strides = array<i32>} : memref<128x128xf32, #tpu.memory_space<vmem>>, vector<128x128xf32>,
    } else {
    }
    return
  }
  func.func @transform_0(%arg0: i32, %arg1: i32) -> (i32, i32) {
    %c0_i32 = arith.constant 0 : i32
    return %arg0, %arg1 : i32, i32
  }
  func.func @transform_1(%arg0: i32, %arg1: i32) -> (i32, i32) {
    %c0_i32 = arith.constant 0 : i32
    %c0_i32_0 = arith.constant 0 : i32
    return %arg1, %c0_i32 : i32, i32
  }
  func.func @transform_2(%arg0: i32, %arg1: i32) -> (i32, i32) {
    %c0_i32 = arith.constant 0 : i32
    %c0_i32_0 = arith.constant 0 : i32
    %c0_i32_1 = arith.constant 0 : i32
    return %c0_i32, %c0_i32_0 : i32, i32
  }
  func.func @transform_3(%arg0: i32, %arg1: i32) -> (i32, i32) {
    %c0_i32 = arith.constant 0 : i32
    %c0_i32_0 = arith.constant 0 : i32
    return %arg0, %c0_i32 : i32, i32
  }
}

module attributes {stable_mosaic.version = 11 : i64} {
  func.func @_xw_kernel(%arg0: i32, %arg1: memref<128x128xf32, #tpu.memory_space<vmem>>, %arg2: memref<128x128xf32, #tpu.memory_space<vmem>>, %arg3: memref<128x128xbf16, #tpu.memory_space<vmem>>) attributes {dimension_semantics = [#tpu.dimension_semantics<parallel>], iteration_bounds = array<i64: 1>, scalar_prefetch = 0 : i64, scratch_operands = 0 : i64, tpu.core_type = #tpu.core_type<tc>, window_params = [{transform_indices = @transform_0, window_bounds = array<i64: 128, 128>}, {pipeline_mode = #tpu.pipeline_mode<synchronous>, transform_indices = @transform_1, window_bounds = array<i64: 128, 128>}, {transform_indices = @transform_2, window_bounds = array<i64: 128, 128>}]} {
    %c0 = arith.constant 0 : index
    %c0_0 = arith.constant 0 : index
    %0 = vector.load %arg1[%c0, %c0_0] : memref<128x128xf32, #tpu.memory_space<vmem>>, vector<128x128xf32>
    %c0_1 = arith.constant 0 : index
    %c0_2 = arith.constant 0 : index
    %1 = vector.load %arg2[%c0_1, %c0_2] : memref<128x128xf32, #tpu.memory_space<vmem>>, vector<128x128xf32>
    %cst = arith.constant dense<0.000000e+00> : vector<128x128xf32>
    %2 = tpu.matmul %0, %1, %cst {dimension_numbers = #tpu.dot_dimension_numbers<[1], [0], [0], [1], [0, 0, 1, 1], [], []>} : vector<128x128xf32>, vector<128x128xf32>, vector<128x128xf32> -> vector<128x128xf32>
    %3 = arith.truncf %2 : vector<128x128xf32> to vector<128x128xbf16>
    %c0_3 = arith.constant 0 : index
    %c0_4 = arith.constant 0 : index
    %4 = vector.load %arg3[%c0_3, %c0_4] : memref<128x128xbf16, #tpu.memory_space<vmem>>, vector<128x128xbf16>
    tpu.vector_store %arg3[%c0_3, %c0_4], %3 {strides = array<i32>} : memref<128x128xbf16, #tpu.memory_space<vmem>>, vector<128x128xbf16>,
    return
  }
  func.func @transform_0(%arg0: i32) -> (i32, i32) {
    %c0_i32 = arith.constant 0 : i32
    %c0_i32_0 = arith.constant 0 : i32
    return %arg0, %c0_i32 : i32, i32
  }
  func.func @transform_1(%arg0: i32) -> (i32, i32) {
    %c0_i32 = arith.constant 0 : i32
    %c0_i32_0 = arith.constant 0 : i32
    %c0_i32_1 = arith.constant 0 : i32
    return %c0_i32, %c0_i32_0 : i32, i32
  }
  func.func @transform_2(%arg0: i32) -> (i32, i32) {
    %c0_i32 = arith.constant 0 : i32
    %c0_i32_0 = arith.constant 0 : i32
    return %arg0, %c0_i32 : i32, i32
  }
}

</mosaic_0001>

<llo_original>
// kernel: gcn_forward.7
$region0: #{gcn_forward.7}
  #allocation0 [shape = 'u32[]', space=smem, size = 0x4, offset = 0x4, fixed_abs, tag = 'smem constant byte address 0x4 - core index']
  #allocation1 [shape = 'u32[72,128]{1,0:T(1,128)}', space=vmem, size = 0x9000, scoped, tag = 'internal scratch']
  #allocation2 [shape = 'f32[128,128]{1,0:T(8,128)}', space=vmem, size = 0x10000, scoped, tag = 'scratch operand']
  %s0 = inlined_call_operand.vmem [shape: bf16[128,128], index: 0, kind: input, shape index: {}]
  %s1 = inlined_call_operand.vmem [shape: bf16[128,128], index: 1, kind: input, shape index: {}]
  %s2 = inlined_call_operand.vmem [shape: f32[1,128], index: 2, kind: input, shape index: {}]
  %s3 = inlined_call_operand.vmem [shape: f32[128,128], index: 3, kind: output, shape index: {}]
  %s4 = sld [smem:[#allocation0]]
  $region30: #{gcn_forward.7} parent=0
    _
  %s6 = ssub.s32 1, %s4
  %s7 = scalar_select 0, %s6, %s4
  // Predicated region
  $region2: #{gcn_forward.7} parent=0 // pred_check
    _
  $region3: #{gcn_forward.7} parent=0 // pred_check_branch
    %9 = sbr.rel (0) target = $region5
  $region4: #{gcn_forward.7} parent=0 // pred_region
    _
  $region5: #{gcn_forward.7} parent=0 // pred_fallthru
    _
  // Predicated region
  $region6: #{gcn_forward.7} parent=0 // pred_check
    _
  $region7: #{gcn_forward.7} parent=0 // pred_check_branch
    %11 = sbr.rel (0) target = $region9
  $region8: #{gcn_forward.7} parent=0 // pred_region
    _
  $region9: #{gcn_forward.7} parent=0 // pred_fallthru
    _
  // Predicated region
  $region10: #{gcn_forward.7} parent=0 // pred_check
    _
  $region11: #{gcn_forward.7} parent=0 // pred_check_branch
    %13 = sbr.rel (0) target = $region13
  $region12: #{gcn_forward.7} parent=0 // pred_region
    _
  $region13: #{gcn_forward.7} parent=0 // pred_fallthru
    _
  %p14 = scmp.eq.s32.totalorder 0, 0
  // Predicated region
  $region14: #{gcn_forward.7} parent=0 // pred_check
    %p15 = pneg %p14
  $region15: #{gcn_forward.7} parent=0 // pred_check_branch
    %17 = sbr.rel (%p15) target = $region17
  $region16: #{gcn_forward.7} parent=0 // pred_region
    %18 = vst [vmem:[#allocation2] sm:$0xff] 0.0
    %19 = vst [vmem:[#allocation2 + $0x8] sm:$0xff] 0.0
    %20 = vst [vmem:[#allocation2 + $0x10] sm:$0xff] 0.0
    %21 = vst [vmem:[#allocation2 + $0x18] sm:$0xff] 0.0
    %22 = vst [vmem:[#allocation2 + $0x20] sm:$0xff] 0.0
    %23 = vst [vmem:[#allocation2 + $0x28] sm:$0xff] 0.0
    %24 = vst [vmem:[#allocation2 + $0x30] sm:$0xff] 0.0
    %25 = vst [vmem:[#allocation2 + $0x38] sm:$0xff] 0.0
    %26 = vst [vmem:[#allocation2 + $0x40] sm:$0xff] 0.0
    %27 = vst [vmem:[#allocation2 + $0x48] sm:$0xff] 0.0
    %28 = vst [vmem:[#allocation2 + $0x50] sm:$0xff] 0.0
    %29 = vst [vmem:[#allocation2 + $0x58] sm:$0xff] 0.0
    %30 = vst [vmem:[#allocation2 + $0x60] sm:$0xff] 0.0
    %31 = vst [vmem:[#allocation2 + $0x68] sm:$0xff] 0.0
    %32 = vst [vmem:[#allocation2 + $0x70] sm:$0xff] 0.0
    %33 = vst [vmem:[#allocation2 + $0x78] sm:$0xff] 0.0
  $region17: #{gcn_forward.7} parent=0 // pred_fallthru
    _
  %v34 = vld [vmem:[#allocation2] sm:$0xff]
  %v35 = vld [vmem:[#allocation2 + $0x8] sm:$0xff]
  %v36 = vld [vmem:[#allocation2 + $0x10] sm:$0xff]
  %v37 = vld [vmem:[#allocation2 + $0x18] sm:$0xff]
  %v38 = vld [vmem:[#allocation2 + $0x20] sm:$0xff]
  %v39 = vld [vmem:[#allocation2 + $0x28] sm:$0xff]
  %v40 = vld [vmem:[#allocation2 + $0x30] sm:$0xff]
  %v41 = vld [vmem:[#allocation2 + $0x38] sm:$0xff]
  %v42 = vld [vmem:[#allocation2 + $0x40] sm:$0xff]
  %v43 = vld [vmem:[#allocation2 + $0x48] sm:$0xff]
  %v44 = vld [vmem:[#allocation2 + $0x50] sm:$0xff]
  %v45 = vld [vmem:[#allocation2 + $0x58] sm:$0xff]
  %v46 = vld [vmem:[#allocation2 + $0x60] sm:$0xff]
  %v47 = vld [vmem:[#allocation2 + $0x68] sm:$0xff]
  %v48 = vld [vmem:[#allocation2 + $0x70] sm:$0xff]
  %v49 = vld [vmem:[#allocation2 + $0x78] sm:$0xff]
  %v50 = vld [vmem:[%s0] sm:$0xf]
  %v51 = vld [vmem:[%s0 + $0x4] sm:$0xf]
  %v52 = vld [vmem:[%s0 + $0x8] sm:$0xf]
  %v53 = vld [vmem:[%s0 + $0xc] sm:$0xf]
  %v54 = vld [vmem:[%s0 + $0x10] sm:$0xf]
  %v55 = vld [vmem:[%s0 + $0x14] sm:$0xf]
  %v56 = vld [vmem:[%s0 + $0x18] sm:$0xf]
  %v57 = vld [vmem:[%s0 + $0x1c] sm:$0xf]
  %v58 = vld [vmem:[%s0 + $0x20] sm:$0xf]
  %v59 = vld [vmem:[%s0 + $0x24] sm:$0xf]
  %v60 = vld [vmem:[%s0 + $0x28] sm:$0xf]
  %v61 = vld [vmem:[%s0 + $0x2c] sm:$0xf]
  %v62 = vld [vmem:[%s0 + $0x30] sm:$0xf]
  %v63 = vld [vmem:[%s0 + $0x34] sm:$0xf]
  %v64 = vld [vmem:[%s0 + $0x38] sm:$0xf]
  %v65 = vld [vmem:[%s0 + $0x3c] sm:$0xf]
  %v66 = vld [vmem:[%s1] sm:$0xf]
  %v67 = vld [vmem:[%s1 + $0x4] sm:$0xf]
  %v68 = vld [vmem:[%s1 + $0x8] sm:$0xf]
  %v69 = vld [vmem:[%s1 + $0xc] sm:$0xf]
  %v70 = vld [vmem:[%s1 + $0x10] sm:$0xf]
  %v71 = vld [vmem:[%s1 + $0x14] sm:$0xf]
  %v72 = vld [vmem:[%s1 + $0x18] sm:$0xf]
  %v73 = vld [vmem:[%s1 + $0x1c] sm:$0xf]
  %v74 = vld [vmem:[%s1 + $0x20] sm:$0xf]
  %v75 = vld [vmem:[%s1 + $0x24] sm:$0xf]
  %v76 = vld [vmem:[%s1 + $0x28] sm:$0xf]
  %v77 = vld [vmem:[%s1 + $0x2c] sm:$0xf]
  %v78 = vld [vmem:[%s1 + $0x30] sm:$0xf]
  %v79 = vld [vmem:[%s1 + $0x34] sm:$0xf]
  %v80 = vld [vmem:[%s1 + $0x38] sm:$0xf]
  %v81 = vld [vmem:[%s1 + $0x3c] sm:$0xf]
  %v98 = vunpack.c.l.b16 %v50
  %v99 = vunpack.c.l.b16 %v51
  %v100 = vunpack.c.l.b16 %v52
  %v101 = vunpack.c.l.b16 %v53
  %v102 = vunpack.c.l.b16 %v54
  %v103 = vunpack.c.l.b16 %v55
  %v104 = vunpack.c.l.b16 %v56
  %v105 = vunpack.c.l.b16 %v57
  %v106 = vunpack.c.l.b16 %v58
  %v107 = vunpack.c.l.b16 %v59
  %v108 = vunpack.c.l.b16 %v60
  %v109 = vunpack.c.l.b16 %v61
  %v110 = vunpack.c.l.b16 %v62
  %v111 = vunpack.c.l.b16 %v63
  %v112 = vunpack.c.l.b16 %v64
  %v113 = vunpack.c.l.b16 %v65
  %v114 = vpack.c.b16 %v99, %v98
  %v115 = vpack.c.b16 %v101, %v100
  %v116 = vpack.c.b16 %v103, %v102
  %v117 = vpack.c.b16 %v105, %v104
  %v118 = vpack.c.b16 %v107, %v106
  %v119 = vpack.c.b16 %v109, %v108
  %v120 = vpack.c.b16 %v111, %v110
  %v121 = vpack.c.b16 %v113, %v112
  %v146 = vunpack.c.l.b16 %v66
  %v147 = vunpack.c.l.b16 %v67
  %v148 = vunpack.c.l.b16 %v68
  %v149 = vunpack.c.l.b16 %v69
  %v150 = vunpack.c.l.b16 %v70
  %v151 = vunpack.c.l.b16 %v71
  %v152 = vunpack.c.l.b16 %v72
  %v153 = vunpack.c.l.b16 %v73
  %v154 = vunpack.c.l.b16 %v74
  %v155 = vunpack.c.l.b16 %v75
  %v156 = vunpack.c.l.b16 %v76
  %v157 = vunpack.c.l.b16 %v77
  %v158 = vunpack.c.l.b16 %v78
  %v159 = vunpack.c.l.b16 %v79
  %v160 = vunpack.c.l.b16 %v80
  %v161 = vunpack.c.l.b16 %v81
  %v162 = vpack.c.b16 %v147, %v146
  %v163 = vpack.c.b16 %v149, %v148
  %v164 = vpack.c.b16 %v151, %v150
  %v165 = vpack.c.b16 %v153, %v152
  %v166 = vpack.c.b16 %v155, %v154
  %v167 = vpack.c.b16 %v157, %v156
  %v168 = vpack.c.b16 %v159, %v158
  %v169 = vpack.c.b16 %v161, %v160
  %178 = vmatpush.bf16.msra.mxu0 %v169
  %179 = vmatpush.bf16.msra.mxu0 %v168
  %180 = vmatpush.bf16.msra.mxu0 %v167
  %181 = vmatpush.bf16.msra.mxu0 %v166
  %182 = vmatpush.bf16.msra.mxu0 %v165
  %183 = vmatpush.bf16.msra.mxu0 %v164
  %184 = vmatpush.bf16.msra.mxu0 %v163
  %185 = vmatpush.bf16.msra.mxu0 %v162
  %186 = vmatmul.bf16.gmra.mxu0 %v114
  %v187 = vpop.f32.mrf.mxu0
  %v188 = vadd.f32 0.0, %v187
  %v189 = vpop.f32.mrf.mxu0
  %v190 = vadd.f32 0.0, %v189
  %191 = vmatmul.bf16.gmra.mxu0 %v115
  %v192 = vpop.f32.mrf.mxu0
  %v193 = vadd.f32 0.0, %v192
  %v194 = vpop.f32.mrf.mxu0
  %v195 = vadd.f32 0.0, %v194
  %196 = vmatmul.bf16.gmra.mxu0 %v116
  %v197 = vpop.f32.mrf.mxu0
  %v198 = vadd.f32 0.0, %v197
  %v199 = vpop.f32.mrf.mxu0
  %v200 = vadd.f32 0.0, %v199
  %201 = vmatmul.bf16.gmra.mxu0 %v117
  %v202 = vpop.f32.mrf.mxu0
  %v203 = vadd.f32 0.0, %v202
  %v204 = vpop.f32.mrf.mxu0
  %v205 = vadd.f32 0.0, %v204
  %206 = vmatmul.bf16.gmra.mxu0 %v118
  %v207 = vpop.f32.mrf.mxu0
  %v208 = vadd.f32 0.0, %v207
  %v209 = vpop.f32.mrf.mxu0
  %v210 = vadd.f32 0.0, %v209
  %211 = vmatmul.bf16.gmra.mxu0 %v119
  %v212 = vpop.f32.mrf.mxu0
  %v213 = vadd.f32 0.0, %v212
  %v214 = vpop.f32.mrf.mxu0
  %v215 = vadd.f32 0.0, %v214
  %216 = vmatmul.bf16.gmra.mxu0 %v120
  %v217 = vpop.f32.mrf.mxu0
  %v218 = vadd.f32 0.0, %v217
  %v219 = vpop.f32.mrf.mxu0
  %v220 = vadd.f32 0.0, %v219
  %221 = vmatmul.bf16.gmra.mxu0 %v121
  %v222 = vpop.f32.mrf.mxu0
  %v223 = vadd.f32 0.0, %v222
  %v224 = vpop.f32.mrf.mxu0
  %v225 = vadd.f32 0.0, %v224
  %226 = vdwg.mxu0
  %v227 = vadd.f32 %v34, %v188
  %v228 = vadd.f32 %v35, %v190
  %v229 = vadd.f32 %v36, %v193
  %v230 = vadd.f32 %v37, %v195
  %v231 = vadd.f32 %v38, %v198
  %v232 = vadd.f32 %v39, %v200
  %v233 = vadd.f32 %v40, %v203
  %v234 = vadd.f32 %v41, %v205
  %v235 = vadd.f32 %v42, %v208
  %v236 = vadd.f32 %v43, %v210
  %v237 = vadd.f32 %v44, %v213
  %v238 = vadd.f32 %v45, %v215
  %v239 = vadd.f32 %v46, %v218
  %v240 = vadd.f32 %v47, %v220
  %v241 = vadd.f32 %v48, %v223
  %v242 = vadd.f32 %v49, %v225
  %243 = vst [vmem:[#allocation2] sm:$0xff] %v227
  %244 = vst [vmem:[#allocation2 + $0x8] sm:$0xff] %v228
  %245 = vst [vmem:[#allocation2 + $0x10] sm:$0xff] %v229
  %246 = vst [vmem:[#allocation2 + $0x18] sm:$0xff] %v230
  %247 = vst [vmem:[#allocation2 + $0x20] sm:$0xff] %v231
  %248 = vst [vmem:[#allocation2 + $0x28] sm:$0xff] %v232
  %249 = vst [vmem:[#allocation2 + $0x30] sm:$0xff] %v233
  %250 = vst [vmem:[#allocation2 + $0x38] sm:$0xff] %v234
  %251 = vst [vmem:[#allocation2 + $0x40] sm:$0xff] %v235
  %252 = vst [vmem:[#allocation2 + $0x48] sm:$0xff] %v236
  %253 = vst [vmem:[#allocation2 + $0x50] sm:$0xff] %v237
  %254 = vst [vmem:[#allocation2 + $0x58] sm:$0xff] %v238
  %255 = vst [vmem:[#allocation2 + $0x60] sm:$0xff] %v239
  %256 = vst [vmem:[#allocation2 + $0x68] sm:$0xff] %v240
  %257 = vst [vmem:[#allocation2 + $0x70] sm:$0xff] %v241
  %258 = vst [vmem:[#allocation2 + $0x78] sm:$0xff] %v242
  // Predicated region
  $region18: #{gcn_forward.7} parent=0 // pred_check
    %p259 = pneg %p14
  $region19: #{gcn_forward.7} parent=0 // pred_check_branch
    %261 = sbr.rel (%p259) target = $region21
  $region20: #{gcn_forward.7} parent=0 // pred_region
    %v262 = vld [vmem:[#allocation2] sm:$0xff]
    %v263 = vld [vmem:[#allocation2 + $0x8] sm:$0xff]
    %v264 = vld [vmem:[#allocation2 + $0x10] sm:$0xff]
    %v265 = vld [vmem:[#allocation2 + $0x18] sm:$0xff]
    %v266 = vld [vmem:[#allocation2 + $0x20] sm:$0xff]
    %v267 = vld [vmem:[#allocation2 + $0x28] sm:$0xff]
    %v268 = vld [vmem:[#allocation2 + $0x30] sm:$0xff]
    %v269 = vld [vmem:[#allocation2 + $0x38] sm:$0xff]
    %v270 = vld [vmem:[#allocation2 + $0x40] sm:$0xff]
    %v271 = vld [vmem:[#allocation2 + $0x48] sm:$0xff]
    %v272 = vld [vmem:[#allocation2 + $0x50] sm:$0xff]
    %v273 = vld [vmem:[#allocation2 + $0x58] sm:$0xff]
    %v274 = vld [vmem:[#allocation2 + $0x60] sm:$0xff]
    %v275 = vld [vmem:[#allocation2 + $0x68] sm:$0xff]
    %v276 = vld [vmem:[#allocation2 + $0x70] sm:$0xff]
    %v277 = vld [vmem:[#allocation2 + $0x78] sm:$0xff]
    %v278 = vld [vmem:[%s2] sm:$0x1]
    %v280 = vperm.slane %v278, 0
    %v282 = vadd.f32 %v262, %v280
    %v283 = vadd.f32 %v263, %v280
    %v284 = vadd.f32 %v264, %v280
    %v285 = vadd.f32 %v265, %v280
    %v286 = vadd.f32 %v266, %v280
    %v287 = vadd.f32 %v267, %v280
    %v288 = vadd.f32 %v268, %v280
    %v289 = vadd.f32 %v269, %v280
    %v290 = vadd.f32 %v270, %v280
    %v291 = vadd.f32 %v271, %v280
    %v292 = vadd.f32 %v272, %v280
    %v293 = vadd.f32 %v273, %v280
    %v294 = vadd.f32 %v274, %v280
    %v295 = vadd.f32 %v275, %v280
    %v296 = vadd.f32 %v276, %v280
    %v297 = vadd.f32 %v277, %v280
    %v298 = vxor.u32 %v282, 2147483648
    %v299 = vxor.u32 %v283, 2147483648
    %v300 = vxor.u32 %v284, 2147483648
    %v301 = vxor.u32 %v285, 2147483648
    %v302 = vxor.u32 %v286, 2147483648
    %v303 = vxor.u32 %v287, 2147483648
    %v304 = vxor.u32 %v288, 2147483648
    %v305 = vxor.u32 %v289, 2147483648
    %v306 = vxor.u32 %v290, 2147483648
    %v307 = vxor.u32 %v291, 2147483648
    %v308 = vxor.u32 %v292, 2147483648
    %v309 = vxor.u32 %v293, 2147483648
    %v310 = vxor.u32 %v294, 2147483648
    %v311 = vxor.u32 %v295, 2147483648
    %v312 = vxor.u32 %v296, 2147483648
    %v313 = vxor.u32 %v297, 2147483648
    %v314 = vmul.f32 %v298, 1.442695
    %v315 = vpow.pop %v314
    %v316 = vmul.f32 %v299, 1.442695
    %v317 = vpow.pop %v316
    %v318 = vmul.f32 %v300, 1.442695
    %v319 = vpow.pop %v318
    %v320 = vmul.f32 %v301, 1.442695
    %v321 = vpow.pop %v320
    %v322 = vmul.f32 %v302, 1.442695
    %v323 = vpow.pop %v322
    %v324 = vmul.f32 %v303, 1.442695
    %v325 = vpow.pop %v324
    %v326 = vmul.f32 %v304, 1.442695
    %v327 = vpow.pop %v326
    %v328 = vmul.f32 %v305, 1.442695
    %v329 = vpow.pop %v328
    %v330 = vmul.f32 %v306, 1.442695
    %v331 = vpow.pop %v330
    %v332 = vmul.f32 %v307, 1.442695
    %v333 = vpow.pop %v332
    %v334 = vmul.f32 %v308, 1.442695
    %v335 = vpow.pop %v334
    %v336 = vmul.f32 %v309, 1.442695
    %v337 = vpow.pop %v336
    %v338 = vmul.f32 %v310, 1.442695
    %v339 = vpow.pop %v338
    %v340 = vmul.f32 %v311, 1.442695
    %v341 = vpow.pop %v340
    %v342 = vmul.f32 %v312, 1.442695
    %v343 = vpow.pop %v342
    %v344 = vmul.f32 %v313, 1.442695
    %v345 = vpow.pop %v344
    %v346 = vadd.f32 %v315, 1.0
    %v347 = vadd.f32 %v317, 1.0
    %v348 = vadd.f32 %v319, 1.0
    %v349 = vadd.f32 %v321, 1.0
    %v350 = vadd.f32 %v323, 1.0
    %v351 = vadd.f32 %v325, 1.0
    %v352 = vadd.f32 %v327, 1.0
    %v353 = vadd.f32 %v329, 1.0
    %v354 = vadd.f32 %v331, 1.0
    %v355 = vadd.f32 %v333, 1.0
    %v356 = vadd.f32 %v335, 1.0
    %v357 = vadd.f32 %v337, 1.0
    %v358 = vadd.f32 %v339, 1.0
    %v359 = vadd.f32 %v341, 1.0
    %v360 = vadd.f32 %v343, 1.0
    %v361 = vadd.f32 %v345, 1.0
    %v362 = vrcp.pop %v346
    %v363 = vmul.f32 %v346, %v362
    %v364 = vsub.f32 1.0, %v363
    %v365 = vmul.f32 %v362, %v364
    %v366 = vadd.f32 %v362, %v365
    %vm367 = vweird.f32 %v346
    %vm368 = vweird.f32 %v362
    %vm369 = vmor %vm367, %vm368
    %v370 = vsel %vm369, %v362, %v366
    %v371 = vand.u32 2147483647, %v346
    %vm372 = vcmp.eq.f32.partialorder %v371, 8.507059e+37
    %v373 = vand.u32 %v346, 2147483648
    %v374 = vor.u32 1.1754944e-38, %v373
    %v375 = vsel %vm372, %v374, %v370
    %v376 = vmul.f32 1.0, %v375
    %v377 = vrcp.pop %v347
    %v378 = vmul.f32 %v347, %v377
    %v379 = vsub.f32 1.0, %v378
    %v380 = vmul.f32 %v377, %v379
    %v381 = vadd.f32 %v377, %v380
    %vm382 = vweird.f32 %v347
    %vm383 = vweird.f32 %v377
    %vm384 = vmor %vm382, %vm383
    %v385 = vsel %vm384, %v377, %v381
    %v386 = vand.u32 2147483647, %v347
    %vm387 = vcmp.eq.f32.partialorder %v386, 8.507059e+37
    %v388 = vand.u32 %v347, 2147483648
    %v389 = vor.u32 1.1754944e-38, %v388
    %v390 = vsel %vm387, %v389, %v385
    %v391 = vmul.f32 1.0, %v390
    %v392 = vrcp.pop %v348
    %v393 = vmul.f32 %v348, %v392
    %v394 = vsub.f32 1.0, %v393
    %v395 = vmul.f32 %v392, %v394
    %v396 = vadd.f32 %v392, %v395
    %vm397 = vweird.f32 %v348
    %vm398 = vweird.f32 %v392
    %vm399 = vmor %vm397, %vm398
    %v400 = vsel %vm399, %v392, %v396
    %v401 = vand.u32 2147483647, %v348
    %vm402 = vcmp.eq.f32.partialorder %v401, 8.507059e+37
    %v403 = vand.u32 %v348, 2147483648
    %v404 = vor.u32 1.1754944e-38, %v403
    %v405 = vsel %vm402, %v404, %v400
    %v406 = vmul.f32 1.0, %v405
    %v407 = vrcp.pop %v349
    %v408 = vmul.f32 %v349, %v407
    %v409 = vsub.f32 1.0, %v408
    %v410 = vmul.f32 %v407, %v409
    %v411 = vadd.f32 %v407, %v410
    %vm412 = vweird.f32 %v349
    %vm413 = vweird.f32 %v407
    %vm414 = vmor %vm412, %vm413
    %v415 = vsel %vm414, %v407, %v411
    %v416 = vand.u32 2147483647, %v349
    %vm417 = vcmp.eq.f32.partialorder %v416, 8.507059e+37
    %v418 = vand.u32 %v349, 2147483648
    %v419 = vor.u32 1.1754944e-38, %v418
    %v420 = vsel %vm417, %v419, %v415
    %v421 = vmul.f32 1.0, %v420
    %v422 = vrcp.pop %v350
    %v423 = vmul.f32 %v350, %v422
    %v424 = vsub.f32 1.0, %v423
    %v425 = vmul.f32 %v422, %v424
    %v426 = vadd.f32 %v422, %v425
    %vm427 = vweird.f32 %v350
    %vm428 = vweird.f32 %v422
    %vm429 = vmor %vm427, %vm428
    %v430 = vsel %vm429, %v422, %v426
    %v431 = vand.u32 2147483647, %v350
    %vm432 = vcmp.eq.f32.partialorder %v431, 8.507059e+37
    %v433 = vand.u32 %v350, 2147483648
    %v434 = vor.u32 1.1754944e-38, %v433
    %v435 = vsel %vm432, %v434, %v430
    %v436 = vmul.f32 1.0, %v435
    %v437 = vrcp.pop %v351
    %v438 = vmul.f32 %v351, %v437
    %v439 = vsub.f32 1.0, %v438
    %v440 = vmul.f32 %v437, %v439
    %v441 = vadd.f32 %v437, %v440
    %vm442 = vweird.f32 %v351
    %vm443 = vweird.f32 %v437
    %vm444 = vmor %vm442, %vm443
    %v445 = vsel %vm444, %v437, %v441
    %v446 = vand.u32 2147483647, %v351
    %vm447 = vcmp.eq.f32.partialorder %v446, 8.507059e+37
    %v448 = vand.u32 %v351, 2147483648
    %v449 = vor.u32 1.1754944e-38, %v448
    %v450 = vsel %vm447, %v449, %v445
    %v451 = vmul.f32 1.0, %v450
    %v452 = vrcp.pop %v352
    %v453 = vmul.f32 %v352, %v452
    %v454 = vsub.f32 1.0, %v453
    %v455 = vmul.f32 %v452, %v454
    %v456 = vadd.f32 %v452, %v455
    %vm457 = vweird.f32 %v352
    %vm458 = vweird.f32 %v452
    %vm459 = vmor %vm457, %vm458
    %v460 = vsel %vm459, %v452, %v456
    %v461 = vand.u32 2147483647, %v352
    %vm462 = vcmp.eq.f32.partialorder %v461, 8.507059e+37
    %v463 = vand.u32 %v352, 2147483648
    %v464 = vor.u32 1.1754944e-38, %v463
    %v465 = vsel %vm462, %v464, %v460
    %v466 = vmul.f32 1.0, %v465
    %v467 = vrcp.pop %v353
    %v468 = vmul.f32 %v353, %v467
    %v469 = vsub.f32 1.0, %v468
    %v470 = vmul.f32 %v467, %v469
    %v471 = vadd.f32 %v467, %v470
    %vm472 = vweird.f32 %v353
    %vm473 = vweird.f32 %v467
    %vm474 = vmor %vm472, %vm473
    %v475 = vsel %vm474, %v467, %v471
    %v476 = vand.u32 2147483647, %v353
    %vm477 = vcmp.eq.f32.partialorder %v476, 8.507059e+37
    %v478 = vand.u32 %v353, 2147483648
    %v479 = vor.u32 1.1754944e-38, %v478
    %v480 = vsel %vm477, %v479, %v475
    %v481 = vmul.f32 1.0, %v480
    %v482 = vrcp.pop %v354
    %v483 = vmul.f32 %v354, %v482
    %v484 = vsub.f32 1.0, %v483
    %v485 = vmul.f32 %v482, %v484
    %v486 = vadd.f32 %v482, %v485
    %vm487 = vweird.f32 %v354
    %vm488 = vweird.f32 %v482
    %vm489 = vmor %vm487, %vm488
    %v490 = vsel %vm489, %v482, %v486
    %v491 = vand.u32 2147483647, %v354
    %vm492 = vcmp.eq.f32.partialorder %v491, 8.507059e+37
    %v493 = vand.u32 %v354, 2147483648
    %v494 = vor.u32 1.1754944e-38, %v493
    %v495 = vsel %vm492, %v494, %v490
    %v496 = vmul.f32 1.0, %v495
    %v497 = vrcp.pop %v355
    %v498 = vmul.f32 %v355, %v497
    %v499 = vsub.f32 1.0, %v498
    %v500 = vmul.f32 %v497, %v499
    %v501 = vadd.f32 %v497, %v500
    %vm502 = vweird.f32 %v355
    %vm503 = vweird.f32 %v497
    %vm504 = vmor %vm502, %vm503
    %v505 = vsel %vm504, %v497, %v501
    %v506 = vand.u32 2147483647, %v355
    %vm507 = vcmp.eq.f32.partialorder %v506, 8.507059e+37
    %v508 = vand.u32 %v355, 2147483648
    %v509 = vor.u32 1.1754944e-38, %v508
    %v510 = vsel %vm507, %v509, %v505
    %v511 = vmul.f32 1.0, %v510
    %v512 = vrcp.pop %v356
    %v513 = vmul.f32 %v356, %v512
    %v514 = vsub.f32 1.0, %v513
    %v515 = vmul.f32 %v512, %v514
    %v516 = vadd.f32 %v512, %v515
    %vm517 = vweird.f32 %v356
    %vm518 = vweird.f32 %v512
    %vm519 = vmor %vm517, %vm518
    %v520 = vsel %vm519, %v512, %v516
    %v521 = vand.u32 2147483647, %v356
    %vm522 = vcmp.eq.f32.partialorder %v521, 8.507059e+37
    %v523 = vand.u32 %v356, 2147483648
    %v524 = vor.u32 1.1754944e-38, %v523
    %v525 = vsel %vm522, %v524, %v520
    %v526 = vmul.f32 1.0, %v525
    %v527 = vrcp.pop %v357
    %v528 = vmul.f32 %v357, %v527
    %v529 = vsub.f32 1.0, %v528
    %v530 = vmul.f32 %v527, %v529
    %v531 = vadd.f32 %v527, %v530
    %vm532 = vweird.f32 %v357
    %vm533 = vweird.f32 %v527
    %vm534 = vmor %vm532, %vm533
    %v535 = vsel %vm534, %v527, %v531
    %v536 = vand.u32 2147483647, %v357
    %vm537 = vcmp.eq.f32.partialorder %v536, 8.507059e+37
    %v538 = vand.u32 %v357, 2147483648
    %v539 = vor.u32 1.1754944e-38, %v538
    %v540 = vsel %vm537, %v539, %v535
    %v541 = vmul.f32 1.0, %v540
    %v542 = vrcp.pop %v358
    %v543 = vmul.f32 %v358, %v542
    %v544 = vsub.f32 1.0, %v543
    %v545 = vmul.f32 %v542, %v544
    %v546 = vadd.f32 %v542, %v545
    %vm547 = vweird.f32 %v358
    %vm548 = vweird.f32 %v542
    %vm549 = vmor %vm547, %vm548
    %v550 = vsel %vm549, %v542, %v546
    %v551 = vand.u32 2147483647, %v358
    %vm552 = vcmp.eq.f32.partialorder %v551, 8.507059e+37
    %v553 = vand.u32 %v358, 2147483648
    %v554 = vor.u32 1.1754944e-38, %v553
    %v555 = vsel %vm552, %v554, %v550
    %v556 = vmul.f32 1.0, %v555
    %v557 = vrcp.pop %v359
    %v558 = vmul.f32 %v359, %v557
    %v559 = vsub.f32 1.0, %v558
    %v560 = vmul.f32 %v557, %v559
    %v561 = vadd.f32 %v557, %v560
    %vm562 = vweird.f32 %v359
    %vm563 = vweird.f32 %v557
    %vm564 = vmor %vm562, %vm563
    %v565 = vsel %vm564, %v557, %v561
    %v566 = vand.u32 2147483647, %v359
    %vm567 = vcmp.eq.f32.partialorder %v566, 8.507059e+37
    %v568 = vand.u32 %v359, 2147483648
    %v569 = vor.u32 1.1754944e-38, %v568
    %v570 = vsel %vm567, %v569, %v565
    %v571 = vmul.f32 1.0, %v570
    %v572 = vrcp.pop %v360
    %v573 = vmul.f32 %v360, %v572
    %v574 = vsub.f32 1.0, %v573
    %v575 = vmul.f32 %v572, %v574
    %v576 = vadd.f32 %v572, %v575
    %vm577 = vweird.f32 %v360
    %vm578 = vweird.f32 %v572
    %vm579 = vmor %vm577, %vm578
    %v580 = vsel %vm579, %v572, %v576
    %v581 = vand.u32 2147483647, %v360
    %vm582 = vcmp.eq.f32.partialorder %v581, 8.507059e+37
    %v583 = vand.u32 %v360, 2147483648
    %v584 = vor.u32 1.1754944e-38, %v583
    %v585 = vsel %vm582, %v584, %v580
    %v586 = vmul.f32 1.0, %v585
    %v587 = vrcp.pop %v361
    %v588 = vmul.f32 %v361, %v587
    %v589 = vsub.f32 1.0, %v588
    %v590 = vmul.f32 %v587, %v589
    %v591 = vadd.f32 %v587, %v590
    %vm592 = vweird.f32 %v361
    %vm593 = vweird.f32 %v587
    %vm594 = vmor %vm592, %vm593
    %v595 = vsel %vm594, %v587, %v591
    %v596 = vand.u32 2147483647, %v361
    %vm597 = vcmp.eq.f32.partialorder %v596, 8.507059e+37
    %v598 = vand.u32 %v361, 2147483648
    %v599 = vor.u32 1.1754944e-38, %v598
    %v600 = vsel %vm597, %v599, %v595
    %v601 = vmul.f32 1.0, %v600
    %602 = vst [vmem:[%s3] sm:$0xff] %v376
    %603 = vst [vmem:[%s3 + $0x8] sm:$0xff] %v391
    %604 = vst [vmem:[%s3 + $0x10] sm:$0xff] %v406
    %605 = vst [vmem:[%s3 + $0x18] sm:$0xff] %v421
    %606 = vst [vmem:[%s3 + $0x20] sm:$0xff] %v436
    %607 = vst [vmem:[%s3 + $0x28] sm:$0xff] %v451
    %608 = vst [vmem:[%s3 + $0x30] sm:$0xff] %v466
    %609 = vst [vmem:[%s3 + $0x38] sm:$0xff] %v481
    %610 = vst [vmem:[%s3 + $0x40] sm:$0xff] %v496
    %611 = vst [vmem:[%s3 + $0x48] sm:$0xff] %v511
    %612 = vst [vmem:[%s3 + $0x50] sm:$0xff] %v526
    %613 = vst [vmem:[%s3 + $0x58] sm:$0xff] %v541
    %614 = vst [vmem:[%s3 + $0x60] sm:$0xff] %v556
    %615 = vst [vmem:[%s3 + $0x68] sm:$0xff] %v571
    %616 = vst [vmem:[%s3 + $0x70] sm:$0xff] %v586
    %617 = vst [vmem:[%s3 + $0x78] sm:$0xff] %v601
  $region21: #{gcn_forward.7} parent=0 // pred_fallthru
    _
  // Predicated region
  $region22: #{gcn_forward.7} parent=0 // pred_check
    _
  $region23: #{gcn_forward.7} parent=0 // pred_check_branch
    %619 = sbr.rel (0) target = $region25
  $region24: #{gcn_forward.7} parent=0 // pred_region
    _
  $region25: #{gcn_forward.7} parent=0 // pred_fallthru
    _
  // Predicated region
  $region26: #{gcn_forward.7} parent=0 // pred_check
    _
  $region27: #{gcn_forward.7} parent=0 // pred_check_branch
    %621 = sbr.rel (0) target = $region29
  $region28: #{gcn_forward.7} parent=0 // pred_region
    _
  $region29: #{gcn_forward.7} parent=0 // pred_fallthru
    _

// kernel: gcn_forward.5
$region0: #{gcn_forward.5}
  #allocation0 [shape = 'u32[]', space=smem, size = 0x4, offset = 0x4, fixed_abs, tag = 'smem constant byte address 0x4 - core index']
  #allocation1 [shape = 'u32[72,128]{1,0:T(1,128)}', space=vmem, size = 0x9000, scoped, tag = 'internal scratch']
  #allocation2 [shape = 'f32[128,128]{1,0:T(8,128)}', space=vmem, size = 0x10000, scoped, tag = 'scratch operand']
  %s0 = inlined_call_operand.vmem [shape: bf16[128,128], index: 0, kind: input, shape index: {}]
  %s1 = inlined_call_operand.vmem [shape: bf16[128,128], index: 1, kind: input, shape index: {}]
  %s2 = inlined_call_operand.vmem [shape: f32[1,128], index: 2, kind: input, shape index: {}]
  %s3 = inlined_call_operand.vmem [shape: f32[128,128], index: 3, kind: output, shape index: {}]
  %s4 = sld [smem:[#allocation0]]
  $region30: #{gcn_forward.5} parent=0
    _
  %s6 = ssub.s32 1, %s4
  %s7 = scalar_select 0, %s6, %s4
  // Predicated region
  $region2: #{gcn_forward.5} parent=0 // pred_check
    _
  $region3: #{gcn_forward.5} parent=0 // pred_check_branch
    %9 = sbr.rel (0) target = $region5
  $region4: #{gcn_forward.5} parent=0 // pred_region
    _
  $region5: #{gcn_forward.5} parent=0 // pred_fallthru
    _
  // Predicated region
  $region6: #{gcn_forward.5} parent=0 // pred_check
    _
  $region7: #{gcn_forward.5} parent=0 // pred_check_branch
    %11 = sbr.rel (0) target = $region9
  $region8: #{gcn_forward.5} parent=0 // pred_region
    _
  $region9: #{gcn_forward.5} parent=0 // pred_fallthru
    _
  // Predicated region
  $region10: #{gcn_forward.5} parent=0 // pred_check
    _
  $region11: #{gcn_forward.5} parent=0 // pred_check_branch
    %13 = sbr.rel (0) target = $region13
  $region12: #{gcn_forward.5} parent=0 // pred_region
    _
  $region13: #{gcn_forward.5} parent=0 // pred_fallthru
    _
  %p14 = scmp.eq.s32.totalorder 0, 0
  // Predicated region
  $region14: #{gcn_forward.5} parent=0 // pred_check
    %p15 = pneg %p14
  $region15: #{gcn_forward.5} parent=0 // pred_check_branch
    %17 = sbr.rel (%p15) target = $region17
  $region16: #{gcn_forward.5} parent=0 // pred_region
    %18 = vst [vmem:[#allocation2] sm:$0xff] 0.0
    %19 = vst [vmem:[#allocation2 + $0x8] sm:$0xff] 0.0
    %20 = vst [vmem:[#allocation2 + $0x10] sm:$0xff] 0.0
    %21 = vst [vmem:[#allocation2 + $0x18] sm:$0xff] 0.0
    %22 = vst [vmem:[#allocation2 + $0x20] sm:$0xff] 0.0
    %23 = vst [vmem:[#allocation2 + $0x28] sm:$0xff] 0.0
    %24 = vst [vmem:[#allocation2 + $0x30] sm:$0xff] 0.0
    %25 = vst [vmem:[#allocation2 + $0x38] sm:$0xff] 0.0
    %26 = vst [vmem:[#allocation2 + $0x40] sm:$0xff] 0.0
    %27 = vst [vmem:[#allocation2 + $0x48] sm:$0xff] 0.0
    %28 = vst [vmem:[#allocation2 + $0x50] sm:$0xff] 0.0
    %29 = vst [vmem:[#allocation2 + $0x58] sm:$0xff] 0.0
    %30 = vst [vmem:[#allocation2 + $0x60] sm:$0xff] 0.0
    %31 = vst [vmem:[#allocation2 + $0x68] sm:$0xff] 0.0
    %32 = vst [vmem:[#allocation2 + $0x70] sm:$0xff] 0.0
    %33 = vst [vmem:[#allocation2 + $0x78] sm:$0xff] 0.0
  $region17: #{gcn_forward.5} parent=0 // pred_fallthru
    _
  %v34 = vld [vmem:[#allocation2] sm:$0xff]
  %v35 = vld [vmem:[#allocation2 + $0x8] sm:$0xff]
  %v36 = vld [vmem:[#allocation2 + $0x10] sm:$0xff]
  %v37 = vld [vmem:[#allocation2 + $0x18] sm:$0xff]
  %v38 = vld [vmem:[#allocation2 + $0x20] sm:$0xff]
  %v39 = vld [vmem:[#allocation2 + $0x28] sm:$0xff]
  %v40 = vld [vmem:[#allocation2 + $0x30] sm:$0xff]
  %v41 = vld [vmem:[#allocation2 + $0x38] sm:$0xff]
  %v42 = vld [vmem:[#allocation2 + $0x40] sm:$0xff]
  %v43 = vld [vmem:[#allocation2 + $0x48] sm:$0xff]
  %v44 = vld [vmem:[#allocation2 + $0x50] sm:$0xff]
  %v45 = vld [vmem:[#allocation2 + $0x58] sm:$0xff]
  %v46 = vld [vmem:[#allocation2 + $0x60] sm:$0xff]
  %v47 = vld [vmem:[#allocation2 + $0x68] sm:$0xff]
  %v48 = vld [vmem:[#allocation2 + $0x70] sm:$0xff]
  %v49 = vld [vmem:[#allocation2 + $0x78] sm:$0xff]
  %v50 = vld [vmem:[%s0] sm:$0xf]
  %v51 = vld [vmem:[%s0 + $0x4] sm:$0xf]
  %v52 = vld [vmem:[%s0 + $0x8] sm:$0xf]
  %v53 = vld [vmem:[%s0 + $0xc] sm:$0xf]
  %v54 = vld [vmem:[%s0 + $0x10] sm:$0xf]
  %v55 = vld [vmem:[%s0 + $0x14] sm:$0xf]
  %v56 = vld [vmem:[%s0 + $0x18] sm:$0xf]
  %v57 = vld [vmem:[%s0 + $0x1c] sm:$0xf]
  %v58 = vld [vmem:[%s0 + $0x20] sm:$0xf]
  %v59 = vld [vmem:[%s0 + $0x24] sm:$0xf]
  %v60 = vld [vmem:[%s0 + $0x28] sm:$0xf]
  %v61 = vld [vmem:[%s0 + $0x2c] sm:$0xf]
  %v62 = vld [vmem:[%s0 + $0x30] sm:$0xf]
  %v63 = vld [vmem:[%s0 + $0x34] sm:$0xf]
  %v64 = vld [vmem:[%s0 + $0x38] sm:$0xf]
  %v65 = vld [vmem:[%s0 + $0x3c] sm:$0xf]
  %v66 = vld [vmem:[%s1] sm:$0xf]
  %v67 = vld [vmem:[%s1 + $0x4] sm:$0xf]
  %v68 = vld [vmem:[%s1 + $0x8] sm:$0xf]
  %v69 = vld [vmem:[%s1 + $0xc] sm:$0xf]
  %v70 = vld [vmem:[%s1 + $0x10] sm:$0xf]
  %v71 = vld [vmem:[%s1 + $0x14] sm:$0xf]
  %v72 = vld [vmem:[%s1 + $0x18] sm:$0xf]
  %v73 = vld [vmem:[%s1 + $0x1c] sm:$0xf]
  %v74 = vld [vmem:[%s1 + $0x20] sm:$0xf]
  %v75 = vld [vmem:[%s1 + $0x24] sm:$0xf]
  %v76 = vld [vmem:[%s1 + $0x28] sm:$0xf]
  %v77 = vld [vmem:[%s1 + $0x2c] sm:$0xf]
  %v78 = vld [vmem:[%s1 + $0x30] sm:$0xf]
  %v79 = vld [vmem:[%s1 + $0x34] sm:$0xf]
  %v80 = vld [vmem:[%s1 + $0x38] sm:$0xf]
  %v81 = vld [vmem:[%s1 + $0x3c] sm:$0xf]
  %v98 = vunpack.c.l.b16 %v50
  %v99 = vunpack.c.l.b16 %v51
  %v100 = vunpack.c.l.b16 %v52
  %v101 = vunpack.c.l.b16 %v53
  %v102 = vunpack.c.l.b16 %v54
  %v103 = vunpack.c.l.b16 %v55
  %v104 = vunpack.c.l.b16 %v56
  %v105 = vunpack.c.l.b16 %v57
  %v106 = vunpack.c.l.b16 %v58
  %v107 = vunpack.c.l.b16 %v59
  %v108 = vunpack.c.l.b16 %v60
  %v109 = vunpack.c.l.b16 %v61
  %v110 = vunpack.c.l.b16 %v62
  %v111 = vunpack.c.l.b16 %v63
  %v112 = vunpack.c.l.b16 %v64
  %v113 = vunpack.c.l.b16 %v65
  %v114 = vpack.c.b16 %v99, %v98
  %v115 = vpack.c.b16 %v101, %v100
  %v116 = vpack.c.b16 %v103, %v102
  %v117 = vpack.c.b16 %v105, %v104
  %v118 = vpack.c.b16 %v107, %v106
  %v119 = vpack.c.b16 %v109, %v108
  %v120 = vpack.c.b16 %v111, %v110
  %v121 = vpack.c.b16 %v113, %v112
  %v146 = vunpack.c.l.b16 %v66
  %v147 = vunpack.c.l.b16 %v67
  %v148 = vunpack.c.l.b16 %v68
  %v149 = vunpack.c.l.b16 %v69
  %v150 = vunpack.c.l.b16 %v70
  %v151 = vunpack.c.l.b16 %v71
  %v152 = vunpack.c.l.b16 %v72
  %v153 = vunpack.c.l.b16 %v73
  %v154 = vunpack.c.l.b16 %v74
  %v155 = vunpack.c.l.b16 %v75
  %v156 = vunpack.c.l.b16 %v76
  %v157 = vunpack.c.l.b16 %v77
  %v158 = vunpack.c.l.b16 %v78
  %v159 = vunpack.c.l.b16 %v79
  %v160 = vunpack.c.l.b16 %v80
  %v161 = vunpack.c.l.b16 %v81
  %v162 = vpack.c.b16 %v147, %v146
  %v163 = vpack.c.b16 %v149, %v148
  %v164 = vpack.c.b16 %v151, %v150
  %v165 = vpack.c.b16 %v153, %v152
  %v166 = vpack.c.b16 %v155, %v154
  %v167 = vpack.c.b16 %v157, %v156
  %v168 = vpack.c.b16 %v159, %v158
  %v169 = vpack.c.b16 %v161, %v160
  %178 = vmatpush.bf16.msra.mxu0 %v169
  %179 = vmatpush.bf16.msra.mxu0 %v168
  %180 = vmatpush.bf16.msra.mxu0 %v167
  %181 = vmatpush.bf16.msra.mxu0 %v166
  %182 = vmatpush.bf16.msra.mxu0 %v165
  %183 = vmatpush.bf16.msra.mxu0 %v164
  %184 = vmatpush.bf16.msra.mxu0 %v163
  %185 = vmatpush.bf16.msra.mxu0 %v162
  %186 = vmatmul.bf16.gmra.mxu0 %v114
  %v187 = vpop.f32.mrf.mxu0
  %v188 = vadd.f32 0.0, %v187
  %v189 = vpop.f32.mrf.mxu0
  %v190 = vadd.f32 0.0, %v189
  %191 = vmatmul.bf16.gmra.mxu0 %v115
  %v192 = vpop.f32.mrf.mxu0
  %v193 = vadd.f32 0.0, %v192
  %v194 = vpop.f32.mrf.mxu0
  %v195 = vadd.f32 0.0, %v194
  %196 = vmatmul.bf16.gmra.mxu0 %v116
  %v197 = vpop.f32.mrf.mxu0
  %v198 = vadd.f32 0.0, %v197
  %v199 = vpop.f32.mrf.mxu0
  %v200 = vadd.f32 0.0, %v199
  %201 = vmatmul.bf16.gmra.mxu0 %v117
  %v202 = vpop.f32.mrf.mxu0
  %v203 = vadd.f32 0.0, %v202
  %v204 = vpop.f32.mrf.mxu0
  %v205 = vadd.f32 0.0, %v204
  %206 = vmatmul.bf16.gmra.mxu0 %v118
  %v207 = vpop.f32.mrf.mxu0
  %v208 = vadd.f32 0.0, %v207
  %v209 = vpop.f32.mrf.mxu0
  %v210 = vadd.f32 0.0, %v209
  %211 = vmatmul.bf16.gmra.mxu0 %v119
  %v212 = vpop.f32.mrf.mxu0
  %v213 = vadd.f32 0.0, %v212
  %v214 = vpop.f32.mrf.mxu0
  %v215 = vadd.f32 0.0, %v214
  %216 = vmatmul.bf16.gmra.mxu0 %v120
  %v217 = vpop.f32.mrf.mxu0
  %v218 = vadd.f32 0.0, %v217
  %v219 = vpop.f32.mrf.mxu0
  %v220 = vadd.f32 0.0, %v219
  %221 = vmatmul.bf16.gmra.mxu0 %v121
  %v222 = vpop.f32.mrf.mxu0
  %v223 = vadd.f32 0.0, %v222
  %v224 = vpop.f32.mrf.mxu0
  %v225 = vadd.f32 0.0, %v224
  %226 = vdwg.mxu0
  %v227 = vadd.f32 %v34, %v188
  %v228 = vadd.f32 %v35, %v190
  %v229 = vadd.f32 %v36, %v193
  %v230 = vadd.f32 %v37, %v195
  %v231 = vadd.f32 %v38, %v198
  %v232 = vadd.f32 %v39, %v200
  %v233 = vadd.f32 %v40, %v203
  %v234 = vadd.f32 %v41, %v205
  %v235 = vadd.f32 %v42, %v208
  %v236 = vadd.f32 %v43, %v210
  %v237 = vadd.f32 %v44, %v213
  %v238 = vadd.f32 %v45, %v215
  %v239 = vadd.f32 %v46, %v218
  %v240 = vadd.f32 %v47, %v220
  %v241 = vadd.f32 %v48, %v223
  %v242 = vadd.f32 %v49, %v225
  %243 = vst [vmem:[#allocation2] sm:$0xff] %v227
  %244 = vst [vmem:[#allocation2 + $0x8] sm:$0xff] %v228
  %245 = vst [vmem:[#allocation2 + $0x10] sm:$0xff] %v229
  %246 = vst [vmem:[#allocation2 + $0x18] sm:$0xff] %v230
  %247 = vst [vmem:[#allocation2 + $0x20] sm:$0xff] %v231
  %248 = vst [vmem:[#allocation2 + $0x28] sm:$0xff] %v232
  %249 = vst [vmem:[#allocation2 + $0x30] sm:$0xff] %v233
  %250 = vst [vmem:[#allocation2 + $0x38] sm:$0xff] %v234
  %251 = vst [vmem:[#allocation2 + $0x40] sm:$0xff] %v235
  %252 = vst [vmem:[#allocation2 + $0x48] sm:$0xff] %v236
  %253 = vst [vmem:[#allocation2 + $0x50] sm:$0xff] %v237
  %254 = vst [vmem:[#allocation2 + $0x58] sm:$0xff] %v238
  %255 = vst [vmem:[#allocation2 + $0x60] sm:$0xff] %v239
  %256 = vst [vmem:[#allocation2 + $0x68] sm:$0xff] %v240
  %257 = vst [vmem:[#allocation2 + $0x70] sm:$0xff] %v241
  %258 = vst [vmem:[#allocation2 + $0x78] sm:$0xff] %v242
  // Predicated region
  $region18: #{gcn_forward.5} parent=0 // pred_check
    %p259 = pneg %p14
  $region19: #{gcn_forward.5} parent=0 // pred_check_branch
    %261 = sbr.rel (%p259) target = $region21
  $region20: #{gcn_forward.5} parent=0 // pred_region
    %v262 = vld [vmem:[#allocation2] sm:$0xff]
    %v263 = vld [vmem:[#allocation2 + $0x8] sm:$0xff]
    %v264 = vld [vmem:[#allocation2 + $0x10] sm:$0xff]
    %v265 = vld [vmem:[#allocation2 + $0x18] sm:$0xff]
    %v266 = vld [vmem:[#allocation2 + $0x20] sm:$0xff]
    %v267 = vld [vmem:[#allocation2 + $0x28] sm:$0xff]
    %v268 = vld [vmem:[#allocation2 + $0x30] sm:$0xff]
    %v269 = vld [vmem:[#allocation2 + $0x38] sm:$0xff]
    %v270 = vld [vmem:[#allocation2 + $0x40] sm:$0xff]
    %v271 = vld [vmem:[#allocation2 + $0x48] sm:$0xff]
    %v272 = vld [vmem:[#allocation2 + $0x50] sm:$0xff]
    %v273 = vld [vmem:[#allocation2 + $0x58] sm:$0xff]
    %v274 = vld [vmem:[#allocation2 + $0x60] sm:$0xff]
    %v275 = vld [vmem:[#allocation2 + $0x68] sm:$0xff]
    %v276 = vld [vmem:[#allocation2 + $0x70] sm:$0xff]
    %v277 = vld [vmem:[#allocation2 + $0x78] sm:$0xff]
    %v278 = vld [vmem:[%s2] sm:$0x1]
    %v280 = vperm.slane %v278, 0
    %v282 = vadd.f32 %v262, %v280
    %v283 = vadd.f32 %v263, %v280
    %v284 = vadd.f32 %v264, %v280
    %v285 = vadd.f32 %v265, %v280
    %v286 = vadd.f32 %v266, %v280
    %v287 = vadd.f32 %v267, %v280
    %v288 = vadd.f32 %v268, %v280
    %v289 = vadd.f32 %v269, %v280
    %v290 = vadd.f32 %v270, %v280
    %v291 = vadd.f32 %v271, %v280
    %v292 = vadd.f32 %v272, %v280
    %v293 = vadd.f32 %v273, %v280
    %v294 = vadd.f32 %v274, %v280
    %v295 = vadd.f32 %v275, %v280
    %v296 = vadd.f32 %v276, %v280
    %v297 = vadd.f32 %v277, %v280
    %v298 = vmax.f32 %v282, 0.0
    %v299 = vmax.f32 %v283, 0.0
    %v300 = vmax.f32 %v284, 0.0
    %v301 = vmax.f32 %v285, 0.0
    %v302 = vmax.f32 %v286, 0.0
    %v303 = vmax.f32 %v287, 0.0
    %v304 = vmax.f32 %v288, 0.0
    %v305 = vmax.f32 %v289, 0.0
    %v306 = vmax.f32 %v290, 0.0
    %v307 = vmax.f32 %v291, 0.0
    %v308 = vmax.f32 %v292, 0.0
    %v309 = vmax.f32 %v293, 0.0
    %v310 = vmax.f32 %v294, 0.0
    %v311 = vmax.f32 %v295, 0.0
    %v312 = vmax.f32 %v296, 0.0
    %v313 = vmax.f32 %v297, 0.0
    %314 = vst [vmem:[%s3] sm:$0xff] %v298
    %315 = vst [vmem:[%s3 + $0x8] sm:$0xff] %v299
    %316 = vst [vmem:[%s3 + $0x10] sm:$0xff] %v300
    %317 = vst [vmem:[%s3 + $0x18] sm:$0xff] %v301
    %318 = vst [vmem:[%s3 + $0x20] sm:$0xff] %v302
    %319 = vst [vmem:[%s3 + $0x28] sm:$0xff] %v303
    %320 = vst [vmem:[%s3 + $0x30] sm:$0xff] %v304
    %321 = vst [vmem:[%s3 + $0x38] sm:$0xff] %v305
    %322 = vst [vmem:[%s3 + $0x40] sm:$0xff] %v306
    %323 = vst [vmem:[%s3 + $0x48] sm:$0xff] %v307
    %324 = vst [vmem:[%s3 + $0x50] sm:$0xff] %v308
    %325 = vst [vmem:[%s3 + $0x58] sm:$0xff] %v309
    %326 = vst [vmem:[%s3 + $0x60] sm:$0xff] %v310
    %327 = vst [vmem:[%s3 + $0x68] sm:$0xff] %v311
    %328 = vst [vmem:[%s3 + $0x70] sm:$0xff] %v312
    %329 = vst [vmem:[%s3 + $0x78] sm:$0xff] %v313
  $region21: #{gcn_forward.5} parent=0 // pred_fallthru
    _
  // Predicated region
  $region22: #{gcn_forward.5} parent=0 // pred_check
    _
  $region23: #{gcn_forward.5} parent=0 // pred_check_branch
    %331 = sbr.rel (0) target = $region25
  $region24: #{gcn_forward.5} parent=0 // pred_region
    _
  $region25: #{gcn_forward.5} parent=0 // pred_fallthru
    _
  // Predicated region
  $region26: #{gcn_forward.5} parent=0 // pred_check
    _
  $region27: #{gcn_forward.5} parent=0 // pred_check_branch
    %333 = sbr.rel (0) target = $region29
  $region28: #{gcn_forward.5} parent=0 // pred_region
    _
  $region29: #{gcn_forward.5} parent=0 // pred_fallthru
    _

// kernel: gcn_forward.4
$region0: #{gcn_forward.4}
  #allocation0 [shape = 'u32[]', space=smem, size = 0x4, offset = 0x4, fixed_abs, tag = 'smem constant byte address 0x4 - core index']
  #allocation1 [shape = 'u32[72,128]{1,0:T(1,128)}', space=vmem, size = 0x9000, scoped, tag = 'internal scratch']
  %s0 = inlined_call_operand.vmem [shape: f32[128,128], index: 0, kind: input, shape index: {}]
  %s1 = inlined_call_operand.vmem [shape: f32[128,128], index: 1, kind: input, shape index: {}]
  %s2 = inlined_call_operand.vmem [shape: bf16[128,128], index: 2, kind: output, shape index: {}]
  %s3 = sld [smem:[#allocation0]]
  $region18: #{gcn_forward.4} parent=0
    _
  %s5 = ssub.s32 1, %s3
  %s6 = scalar_select 0, %s5, %s3
  // Predicated region
  $region2: #{gcn_forward.4} parent=0 // pred_check
    _
  $region3: #{gcn_forward.4} parent=0 // pred_check_branch
    %8 = sbr.rel (0) target = $region5
  $region4: #{gcn_forward.4} parent=0 // pred_region
    _
  $region5: #{gcn_forward.4} parent=0 // pred_fallthru
    _
  // Predicated region
  $region6: #{gcn_forward.4} parent=0 // pred_check
    _
  $region7: #{gcn_forward.4} parent=0 // pred_check_branch
    %10 = sbr.rel (0) target = $region9
  $region8: #{gcn_forward.4} parent=0 // pred_region
    _
  $region9: #{gcn_forward.4} parent=0 // pred_fallthru
    _
  %v11 = vld [vmem:[%s0] sm:$0xff]
  %v12 = vld [vmem:[%s0 + $0x8] sm:$0xff]
  %v13 = vld [vmem:[%s0 + $0x10] sm:$0xff]
  %v14 = vld [vmem:[%s0 + $0x18] sm:$0xff]
  %v15 = vld [vmem:[%s0 + $0x20] sm:$0xff]
  %v16 = vld [vmem:[%s0 + $0x28] sm:$0xff]
  %v17 = vld [vmem:[%s0 + $0x30] sm:$0xff]
  %v18 = vld [vmem:[%s0 + $0x38] sm:$0xff]
  %v19 = vld [vmem:[%s0 + $0x40] sm:$0xff]
  %v20 = vld [vmem:[%s0 + $0x48] sm:$0xff]
  %v21 = vld [vmem:[%s0 + $0x50] sm:$0xff]
  %v22 = vld [vmem:[%s0 + $0x58] sm:$0xff]
  %v23 = vld [vmem:[%s0 + $0x60] sm:$0xff]
  %v24 = vld [vmem:[%s0 + $0x68] sm:$0xff]
  %v25 = vld [vmem:[%s0 + $0x70] sm:$0xff]
  %v26 = vld [vmem:[%s0 + $0x78] sm:$0xff]
  %v27 = vld [vmem:[%s1] sm:$0xff]
  %v28 = vld [vmem:[%s1 + $0x8] sm:$0xff]
  %v29 = vld [vmem:[%s1 + $0x10] sm:$0xff]
  %v30 = vld [vmem:[%s1 + $0x18] sm:$0xff]
  %v31 = vld [vmem:[%s1 + $0x20] sm:$0xff]
  %v32 = vld [vmem:[%s1 + $0x28] sm:$0xff]
  %v33 = vld [vmem:[%s1 + $0x30] sm:$0xff]
  %v34 = vld [vmem:[%s1 + $0x38] sm:$0xff]
  %v35 = vld [vmem:[%s1 + $0x40] sm:$0xff]
  %v36 = vld [vmem:[%s1 + $0x48] sm:$0xff]
  %v37 = vld [vmem:[%s1 + $0x50] sm:$0xff]
  %v38 = vld [vmem:[%s1 + $0x58] sm:$0xff]
  %v39 = vld [vmem:[%s1 + $0x60] sm:$0xff]
  %v40 = vld [vmem:[%s1 + $0x68] sm:$0xff]
  %v41 = vld [vmem:[%s1 + $0x70] sm:$0xff]
  %v42 = vld [vmem:[%s1 + $0x78] sm:$0xff]
  %43 = vmatpush.msra.mxu0 %v42
  %44 = vmatpush.msra.mxu0 %v41
  %45 = vmatpush.msra.mxu0 %v40
  %46 = vmatpush.msra.mxu0 %v39
  %47 = vmatpush.msra.mxu0 %v38
  %48 = vmatpush.msra.mxu0 %v37
  %49 = vmatpush.msra.mxu0 %v36
  %50 = vmatpush.msra.mxu0 %v35
  %51 = vmatpush.msra.mxu0 %v34
  %52 = vmatpush.msra.mxu0 %v33
  %53 = vmatpush.msra.mxu0 %v32
  %54 = vmatpush.msra.mxu0 %v31
  %55 = vmatpush.msra.mxu0 %v30
  %56 = vmatpush.msra.mxu0 %v29
  %57 = vmatpush.msra.mxu0 %v28
  %58 = vmatpush.msra.mxu0 %v27
  %59 = vmatmul.f32.gmra.mxu0 %v11
  %v60 = vpop.f32.mrf.mxu0
  %v61 = vadd.f32 0.0, %v60
  %62 = vmatmul.f32.gmra.mxu0 %v12
  %v63 = vpop.f32.mrf.mxu0
  %v64 = vadd.f32 0.0, %v63
  %65 = vmatmul.f32.gmra.mxu0 %v13
  %v66 = vpop.f32.mrf.mxu0
  %v67 = vadd.f32 0.0, %v66
  %68 = vmatmul.f32.gmra.mxu0 %v14
  %v69 = vpop.f32.mrf.mxu0
  %v70 = vadd.f32 0.0, %v69
  %71 = vmatmul.f32.gmra.mxu0 %v15
  %v72 = vpop.f32.mrf.mxu0
  %v73 = vadd.f32 0.0, %v72
  %74 = vmatmul.f32.gmra.mxu0 %v16
  %v75 = vpop.f32.mrf.mxu0
  %v76 = vadd.f32 0.0, %v75
  %77 = vmatmul.f32.gmra.mxu0 %v17
  %v78 = vpop.f32.mrf.mxu0
  %v79 = vadd.f32 0.0, %v78
  %80 = vmatmul.f32.gmra.mxu0 %v18
  %v81 = vpop.f32.mrf.mxu0
  %v82 = vadd.f32 0.0, %v81
  %83 = vmatmul.f32.gmra.mxu0 %v19
  %v84 = vpop.f32.mrf.mxu0
  %v85 = vadd.f32 0.0, %v84
  %86 = vmatmul.f32.gmra.mxu0 %v20
  %v87 = vpop.f32.mrf.mxu0
  %v88 = vadd.f32 0.0, %v87
  %89 = vmatmul.f32.gmra.mxu0 %v21
  %v90 = vpop.f32.mrf.mxu0
  %v91 = vadd.f32 0.0, %v90
  %92 = vmatmul.f32.gmra.mxu0 %v22
  %v93 = vpop.f32.mrf.mxu0
  %v94 = vadd.f32 0.0, %v93
  %95 = vmatmul.f32.gmra.mxu0 %v23
  %v96 = vpop.f32.mrf.mxu0
  %v97 = vadd.f32 0.0, %v96
  %98 = vmatmul.f32.gmra.mxu0 %v24
  %v99 = vpop.f32.mrf.mxu0
  %v100 = vadd.f32 0.0, %v99
  %101 = vmatmul.f32.gmra.mxu0 %v25
  %v102 = vpop.f32.mrf.mxu0
  %v103 = vadd.f32 0.0, %v102
  %104 = vmatmul.f32.gmra.mxu0 %v26
  %v105 = vpop.f32.mrf.mxu0
  %v106 = vadd.f32 0.0, %v105
  %107 = vdwg.mxu0
  %v108 = vpack.c.bf16 %v61, %v61
  %v109 = vpack.c.bf16 %v64, %v64
  %v110 = vpack.c.bf16 %v67, %v67
  %v111 = vpack.c.bf16 %v70, %v70
  %v112 = vpack.c.bf16 %v73, %v73
  %v113 = vpack.c.bf16 %v76, %v76
  %v114 = vpack.c.bf16 %v79, %v79
  %v115 = vpack.c.bf16 %v82, %v82
  %v116 = vpack.c.bf16 %v85, %v85
  %v117 = vpack.c.bf16 %v88, %v88
  %v118 = vpack.c.bf16 %v91, %v91
  %v119 = vpack.c.bf16 %v94, %v94
  %v120 = vpack.c.bf16 %v97, %v97
  %v121 = vpack.c.bf16 %v100, %v100
  %v122 = vpack.c.bf16 %v103, %v103
  %v123 = vpack.c.bf16 %v106, %v106
  %124 = vst [vmem:[%s2] sm:$0xf] %v108
  %125 = vst [vmem:[%s2 + $0x4] sm:$0xf] %v109
  %126 = vst [vmem:[%s2 + $0x8] sm:$0xf] %v110
  %127 = vst [vmem:[%s2 + $0xc] sm:$0xf] %v111
  %128 = vst [vmem:[%s2 + $0x10] sm:$0xf] %v112
  %129 = vst [vmem:[%s2 + $0x14] sm:$0xf] %v113
  %130 = vst [vmem:[%s2 + $0x18] sm:$0xf] %v114
  %131 = vst [vmem:[%s2 + $0x1c] sm:$0xf] %v115
  %132 = vst [vmem:[%s2 + $0x20] sm:$0xf] %v116
  %133 = vst [vmem:[%s2 + $0x24] sm:$0xf] %v117
  %134 = vst [vmem:[%s2 + $0x28] sm:$0xf] %v118
  %135 = vst [vmem:[%s2 + $0x2c] sm:$0xf] %v119
  %136 = vst [vmem:[%s2 + $0x30] sm:$0xf] %v120
  %137 = vst [vmem:[%s2 + $0x34] sm:$0xf] %v121
  %138 = vst [vmem:[%s2 + $0x38] sm:$0xf] %v122
  %139 = vst [vmem:[%s2 + $0x3c] sm:$0xf] %v123
  // Predicated region
  $region10: #{gcn_forward.4} parent=0 // pred_check
    _
  $region11: #{gcn_forward.4} parent=0 // pred_check_branch
    %141 = sbr.rel (0) target = $region13
  $region12: #{gcn_forward.4} parent=0 // pred_region
    _
  $region13: #{gcn_forward.4} parent=0 // pred_fallthru
    _
  // Predicated region
  $region14: #{gcn_forward.4} parent=0 // pred_check
    _
  $region15: #{gcn_forward.4} parent=0 // pred_check_branch
    %143 = sbr.rel (0) target = $region17
  $region16: #{gcn_forward.4} parent=0 // pred_region
    _
  $region17: #{gcn_forward.4} parent=0 // pred_fallthru
    _

</llo_original>
